<compile_context>
chip_gen: v5e
topology: v5e:2x2
jax: 0.10.0
libtpu: 0.0.40
codegen_flags: <defaults>
</compile_context>

<pallas_src>
import jax
import jax.numpy as jnp
from jax import lax
from jax.experimental import pallas as pl
from jax.experimental.pallas import tpu as pltpu

# ----------------------- config (cfg) -----------------------
B = 2            # batch
S = 8            # patch / sequence length
D_MODEL = 32     # cfg.d_model
N_HEADS = 4      # cfg.n_heads
D_HEAD = 8       # cfg.d_head  (n_heads * d_head == d_model)
CAUSAL_MASK = True   # cfg.mask

HD = N_HEADS * D_HEAD            # 32 (== D_MODEL)
QK = 2 * HD                      # 64 packed Q|K lanes (head-major)
VP = N_HEADS * D_MODEL           # 128 packed folded-V' lanes (lane-dense)
INV_SQRT_DH = 1.0 / float(D_HEAD) ** 0.5
NEG_INF = -1e30                  # finite mask value (causal diag never masked -> safe)


def _mha_kernel(x_ref, wqk_ref, bqk_ref, wvp_ref, bvp_ref, bo_ref, out_ref):
    """Single grid step: whole (flattened) batch, all heads."""
    x = x_ref[...]                                                    # (B*S, D_MODEL)

    # Two fused projections (one MXU matmul each):
    #   qk = x @ [Wq_h^T|Wk_h^T]_h + b    -> (B*S, 2*H*dh)
    #   v' = x @ [Wv_h^T @ Wo_h^T]_h + b' -> (B*S, H*D)   (W_v.W_o folded offline)
    qk = jnp.dot(x, wqk_ref[...],
                 preferred_element_type=jnp.float32) + bqk_ref[...]   # (B*S, 64)
    vp = jnp.dot(x, wvp_ref[...],
                 preferred_element_type=jnp.float32) + bvp_ref[...]   # (B*S, 128)

    if CAUSAL_MASK:
        row = lax.broadcasted_iota(jnp.int32, (S, S), 0)
        col = lax.broadcasted_iota(jnp.int32, (S, S), 1)
        causal = col > row                                            # True where masked

    bo = bo_ref[...]                                                  # (1, D_MODEL)

    # Static loops over batch (sublane-tile-aligned row slices) and heads.
    for b in range(B):
        r0 = b * S
        acc = jnp.zeros((S, D_MODEL), jnp.float32)
        for h in range(N_HEADS):
            c0 = h * 2 * D_HEAD                                       # head-major Q|K window
            q = qk[r0:r0 + S, c0:c0 + D_HEAD]                         # (S, dh)
            k = qk[r0:r0 + S, c0 + D_HEAD:c0 + 2 * D_HEAD]            # (S, dh)
            v = vp[r0:r0 + S, h * D_MODEL:(h + 1) * D_MODEL]          # (S, D)  folded V'

            # Q @ K^T via contraction on dim 1 of both operands (no explicit transpose).
            scores = lax.dot_general(q, k, (((1,), (1,)), ((), ())),
                                     preferred_element_type=jnp.float32)   # (S, S)
            if CAUSAL_MASK:
                logits = jnp.where(causal, NEG_INF, scores * INV_SQRT_DH)
            else:
                # Reference quirk: softmax of the UNscaled scores in the no-mask branch.
                logits = scores

            m = jnp.max(logits, axis=-1, keepdims=True)
            p = jnp.exp(logits - m)
            p = p / jnp.sum(p, axis=-1, keepdims=True)                # exact divide

            acc = acc + jnp.dot(p, v, preferred_element_type=jnp.float32)  # (S, D)

        out_ref[r0:r0 + S, :] = (acc + bo).astype(out_ref.dtype)


def pack_params(params):
    """Pack weights once, outside the kernel.

    wqk : (D, 2*H*dh) head-major [Wq_h^T | Wk_h^T] blocks
    bqk : (1, 2*H*dh)
    wvp : (D, H*D)    folded  W'_h = Wv_h^T @ Wo^T[h*dh:(h+1)*dh, :]
    bvp : (1, H*D)    folded  b'_h = bv_h @ Wo^T[h*dh:(h+1)*dh, :]
    bo  : (1, D)
    """
    wq, wk, wv = params["wq"], params["wk"], params["wv"]     # (H, dh, D)
    bq, bk, bv = params["bq"], params["bk"], params["bv"]     # (H, dh)
    wo_t = params["wo"].T                                     # (D, D)

    wqk_cols, bqk_cols, wvp_cols, bvp_cols = [], [], [], []
    for h in range(N_HEADS):
        wo_h = wo_t[h * D_HEAD:(h + 1) * D_HEAD, :]           # (dh, D)
        wqk_cols += [wq[h].T, wk[h].T]                        # (D, dh) each
        bqk_cols += [bq[h], bk[h]]                            # (dh,) each
        wvp_cols.append(wv[h].T @ wo_h)                       # (D, D)
        bvp_cols.append(bv[h] @ wo_h)                         # (D,)

    wqk = jnp.concatenate(wqk_cols, axis=1)                   # (D, 64)
    bqk = jnp.concatenate(bqk_cols).reshape(1, QK)            # (1, 64)
    wvp = jnp.concatenate(wvp_cols, axis=1)                   # (D, 128)
    bvp = jnp.concatenate(bvp_cols).reshape(1, VP)            # (1, 128)
    bo = params["bo"].reshape(1, D_MODEL)                     # (1, D)
    return wqk, bqk, wvp, bvp, bo


def multi_head_attention(x, wqk, bqk, wvp, bvp, bo):
    """x: (B, S, D_MODEL) float32; packed weights from pack_params."""
    x2d = x.reshape(B * S, D_MODEL)                           # wrapper-side layout plumbing
    out2d = pl.pallas_call(
        _mha_kernel,
        out_shape=jax.ShapeDtypeStruct((B * S, D_MODEL), jnp.float32),
        grid_spec=pltpu.PrefetchScalarGridSpec(
            num_scalar_prefetch=0,
            grid=(1,),                                        # single step: no per-step overhead
            in_specs=[
                pl.BlockSpec((B * S, D_MODEL), lambda i: (0, 0)),   # x (flattened batch)
                pl.BlockSpec((D_MODEL, QK), lambda i: (0, 0)),      # packed W_q|W_k
                pl.BlockSpec((1, QK), lambda i: (0, 0)),            # packed b_q|b_k
                pl.BlockSpec((D_MODEL, VP), lambda i: (0, 0)),      # folded W_v.W_o
                pl.BlockSpec((1, VP), lambda i: (0, 0)),            # folded b_v.W_o
                pl.BlockSpec((1, D_MODEL), lambda i: (0, 0)),       # b_o
            ],
            out_specs=pl.BlockSpec((B * S, D_MODEL), lambda i: (0, 0)),
        ),
        compiler_params=pltpu.CompilerParams(
            dimension_semantics=("arbitrary",)),
    )(x2d, wqk, bqk, wvp, bvp, bo)
    return out2d.reshape(B, S, D_MODEL)


def _reference(x, params):
    """Pure-JAX reference mirroring the PyTorch forward (f32 end to end)."""
    outs = []
    for h in range(N_HEADS):
        q = x @ params["wq"][h].T + params["bq"][h]
        k = x @ params["wk"][h].T + params["bk"][h]
        v = x @ params["wv"][h].T + params["bv"][h]
        scores = q @ jnp.swapaxes(k, -1, -2)
        scaled = scores / (float(D_HEAD) ** 0.5)
        if CAUSAL_MASK:
            mask = jnp.triu(jnp.ones((S, S), bool), k=1)
            logits = jnp.where(mask, -jnp.inf, scaled)
        else:
            logits = scores
        p = jax.nn.softmax(logits, axis=-1)
        outs.append(p @ v)
    concat = jnp.concatenate(outs, axis=-1)
    return concat @ params["wo"].T + params["bo"]


def _init_params(key):
    ks = jax.random.split(key, 8)
    scale = 0.05
    return {
        # PyTorch nn.Linear(d_model, d_head) weight layout: (d_head, d_model)
        "wq": scale * jax.random.normal(ks[0], (N_HEADS, D_HEAD, D_MODEL), jnp.float32),
        "bq": scale * jax.random.normal(ks[1], (N_HEADS, D_HEAD), jnp.float32),
        "wk": scale * jax.random.normal(ks[2], (N_HEADS, D_HEAD, D_MODEL), jnp.float32),
        "bk": scale * jax.random.normal(ks[3], (N_HEADS, D_HEAD), jnp.float32),
        "wv": scale * jax.random.normal(ks[4], (N_HEADS, D_HEAD, D_MODEL), jnp.float32),
        "bv": scale * jax.random.normal(ks[5], (N_HEADS, D_HEAD), jnp.float32),
        # W_o: nn.Linear(d_model, d_model) weight: (d_model, d_model)
        "wo": scale * jax.random.normal(ks[6], (D_MODEL, D_MODEL), jnp.float32),
        "bo": scale * jax.random.normal(ks[7], (D_MODEL,), jnp.float32),
        # per-head `self.output` Linear exists in __init__ but is unused in forward.
    }


if __name__ == "__main__":
    key = jax.random.PRNGKey(0)
    kx, kp = jax.random.split(key)
    x = jax.random.normal(kx, (B, S, D_MODEL), jnp.float32)
    params = _init_params(kp)
    wqk, bqk, wvp, bvp, bo = pack_params(params)   # pack / fold W_v.W_o once, outside the kernel

    out = multi_head_attention(x, wqk, bqk, wvp, bvp, bo)
    out = jax.block_until_ready(out)

    ref = _reference(x, params)
    assert out.shape == (B, S, D_MODEL)
    err = float(jnp.max(jnp.abs(out - ref)))
    assert jnp.allclose(out, ref, atol=1e-4, rtol=1e-4), err
    print("KERNEL_OK")
</pallas_src>

<mosaic_0001>
module attributes {stable_mosaic.version = 11 : i64} {
  func.func @_mha_kernel(%arg0: i32, %arg1: memref<16x32xf32, #tpu.memory_space<vmem>>, %arg2: memref<32x64xf32, #tpu.memory_space<vmem>>, %arg3: memref<1x64xf32, #tpu.memory_space<vmem>>, %arg4: memref<32x128xf32, #tpu.memory_space<vmem>>, %arg5: memref<1x128xf32, #tpu.memory_space<vmem>>, %arg6: memref<1x32xf32, #tpu.memory_space<vmem>>, %arg7: memref<16x32xf32, #tpu.memory_space<vmem>>) attributes {dimension_semantics = [#tpu.dimension_semantics<arbitrary>], iteration_bounds = array<i64: 1>, scalar_prefetch = 0 : i64, scratch_operands = 0 : i64, tpu.core_type = #tpu.core_type<tc>, window_params = [{pipeline_mode = #tpu.pipeline_mode<synchronous>, transform_indices = @transform_0, window_bounds = array<i64: 16, 32>}, {pipeline_mode = #tpu.pipeline_mode<synchronous>, transform_indices = @transform_1, window_bounds = array<i64: 32, 64>}, {pipeline_mode = #tpu.pipeline_mode<synchronous>, transform_indices = @transform_2, window_bounds = array<i64: 1, 64>}, {pipeline_mode = #tpu.pipeline_mode<synchronous>, transform_indices = @transform_3, window_bounds = array<i64: 32, 128>}, {pipeline_mode = #tpu.pipeline_mode<synchronous>, transform_indices = @transform_4, window_bounds = array<i64: 1, 128>}, {pipeline_mode = #tpu.pipeline_mode<synchronous>, transform_indices = @transform_5, window_bounds = array<i64: 1, 32>}, {pipeline_mode = #tpu.pipeline_mode<synchronous>, transform_indices = @transform_6, window_bounds = array<i64: 16, 32>}]} {
    %c0 = arith.constant 0 : index
    %c0_0 = arith.constant 0 : index
    %0 = vector.load %arg1[%c0, %c0_0] : memref<16x32xf32, #tpu.memory_space<vmem>>, vector<16x32xf32>
    %c0_1 = arith.constant 0 : index
    %c0_2 = arith.constant 0 : index
    %1 = vector.load %arg2[%c0_1, %c0_2] : memref<32x64xf32, #tpu.memory_space<vmem>>, vector<32x64xf32>
    %cst = arith.constant dense<0.000000e+00> : vector<16x64xf32>
    %2 = tpu.matmul %0, %1, %cst {dimension_numbers = #tpu.dot_dimension_numbers<[1], [0], [0], [1], [0, 0, 1, 1], [], []>} : vector<16x32xf32>, vector<32x64xf32>, vector<16x64xf32> -> vector<16x64xf32>
    %c0_3 = arith.constant 0 : index
    %c0_4 = arith.constant 0 : index
    %3 = vector.load %arg3[%c0_3, %c0_4] : memref<1x64xf32, #tpu.memory_space<vmem>>, vector<1x64xf32>
    %4 = vector.broadcast %3 : vector<1x64xf32> to vector<16x64xf32>
    %5 = arith.addf %2, %4 : vector<16x64xf32>
    %c0_5 = arith.constant 0 : index
    %c0_6 = arith.constant 0 : index
    %6 = vector.load %arg4[%c0_5, %c0_6] : memref<32x128xf32, #tpu.memory_space<vmem>>, vector<32x128xf32>
    %cst_7 = arith.constant dense<0.000000e+00> : vector<16x128xf32>
    %7 = tpu.matmul %0, %6, %cst_7 {dimension_numbers = #tpu.dot_dimension_numbers<[1], [0], [0], [1], [0, 0, 1, 1], [], []>} : vector<16x32xf32>, vector<32x128xf32>, vector<16x128xf32> -> vector<16x128xf32>
    %c0_8 = arith.constant 0 : index
    %c0_9 = arith.constant 0 : index
    %8 = vector.load %arg5[%c0_8, %c0_9] : memref<1x128xf32, #tpu.memory_space<vmem>>, vector<1x128xf32>
    %9 = vector.broadcast %8 : vector<1x128xf32> to vector<16x128xf32>
    %10 = arith.addf %7, %9 : vector<16x128xf32>
    %11 = tpu.iota {dimensions = array<i32: 0>} : vector<8x8xi32>
    %12 = tpu.iota {dimensions = array<i32: 1>} : vector<8x8xi32>
    %13 = arith.cmpi sgt, %12, %11 : vector<8x8xi32>
    %c0_10 = arith.constant 0 : index
    %c0_11 = arith.constant 0 : index
    %14 = vector.load %arg6[%c0_10, %c0_11] : memref<1x32xf32, #tpu.memory_space<vmem>>, vector<1x32xf32>
    %cst_12 = arith.constant 0.000000e+00 : f32
    %15 = vector.broadcast %cst_12 : f32 to vector<8x32xf32>
    %16 = vector.extract_strided_slice %5 {offsets = [0, 0], sizes = [8, 8], strides = [1, 1]} : vector<16x64xf32> to vector<8x8xf32>
    %17 = vector.extract_strided_slice %5 {offsets = [0, 8], sizes = [8, 8], strides = [1, 1]} : vector<16x64xf32> to vector<8x8xf32>
    %18 = vector.extract_strided_slice %10 {offsets = [0, 0], sizes = [8, 32], strides = [1, 1]} : vector<16x128xf32> to vector<8x32xf32>
    %cst_13 = arith.constant dense<0.000000e+00> : vector<8x8xf32>
    %19 = tpu.matmul %16, %17, %cst_13 {dimension_numbers = #tpu.dot_dimension_numbers<[1], [1], [0], [0], [0, 0, 1, 0], [], []>} : vector<8x8xf32>, vector<8x8xf32>, vector<8x8xf32> -> vector<8x8xf32>
    %cst_14 = arith.constant 0.353553385 : f32
    %20 = vector.broadcast %cst_14 : f32 to vector<8x8xf32>
    %21 = arith.mulf %19, %20 : vector<8x8xf32>
    %cst_15 = arith.constant -1.000000e+30 : f32
    %22 = vector.broadcast %cst_15 : f32 to vector<8x8xf32>
    %23 = arith.select %13, %22, %21 : vector<8x8xi1>, vector<8x8xf32>
    %cst_16 = arith.constant dense<0xFF800000> : vector<8xf32>
    %24 = vector.multi_reduction <maximumf>, %23, %cst_16 [1] : vector<8x8xf32> to vector<8xf32>
    %25 = vector.shape_cast %24 : vector<8xf32> to vector<8x1xf32>
    %26 = vector.broadcast %25 : vector<8x1xf32> to vector<8x8xf32>
    %27 = arith.subf %23, %26 : vector<8x8xf32>
    %28 = math.exp %27 : vector<8x8xf32>
    %cst_17 = arith.constant dense<0.000000e+00> : vector<8xf32>
    %29 = vector.multi_reduction <add>, %28, %cst_17 [1] : vector<8x8xf32> to vector<8xf32>
    %30 = vector.shape_cast %29 : vector<8xf32> to vector<8x1xf32>
    %31 = vector.broadcast %30 : vector<8x1xf32> to vector<8x8xf32>
    %32 = arith.divf %28, %31 : vector<8x8xf32>
    %cst_18 = arith.constant dense<0.000000e+00> : vector<8x32xf32>
    %33 = tpu.matmul %32, %18, %cst_18 {dimension_numbers = #tpu.dot_dimension_numbers<[1], [0], [0], [1], [0, 0, 1, 1], [], []>} : vector<8x8xf32>, vector<8x32xf32>, vector<8x32xf32> -> vector<8x32xf32>
    %34 = arith.addf %15, %33 : vector<8x32xf32>
    %35 = vector.extract_strided_slice %5 {offsets = [0, 16], sizes = [8, 8], strides = [1, 1]} : vector<16x64xf32> to vector<8x8xf32>
    %36 = vector.extract_strided_slice %5 {offsets = [0, 24], sizes = [8, 8], strides = [1, 1]} : vector<16x64xf32> to vector<8x8xf32>
    %37 = vector.extract_strided_slice %10 {offsets = [0, 32], sizes = [8, 32], strides = [1, 1]} : vector<16x128xf32> to vector<8x32xf32>
    %cst_19 = arith.constant dense<0.000000e+00> : vector<8x8xf32>
    %38 = tpu.matmul %35, %36, %cst_19 {dimension_numbers = #tpu.dot_dimension_numbers<[1], [1], [0], [0], [0, 0, 1, 0], [], []>} : vector<8x8xf32>, vector<8x8xf32>, vector<8x8xf32> -> vector<8x8xf32>
    %cst_20 = arith.constant 0.353553385 : f32
    %39 = vector.broadcast %cst_20 : f32 to vector<8x8xf32>
    %40 = arith.mulf %38, %39 : vector<8x8xf32>
    %cst_21 = arith.constant -1.000000e+30 : f32
    %41 = vector.broadcast %cst_21 : f32 to vector<8x8xf32>
    %42 = arith.select %13, %41, %40 : vector<8x8xi1>, vector<8x8xf32>
    %cst_22 = arith.constant dense<0xFF800000> : vector<8xf32>
    %43 = vector.multi_reduction <maximumf>, %42, %cst_22 [1] : vector<8x8xf32> to vector<8xf32>
    %44 = vector.shape_cast %43 : vector<8xf32> to vector<8x1xf32>
    %45 = vector.broadcast %44 : vector<8x1xf32> to vector<8x8xf32>
    %46 = arith.subf %42, %45 : vector<8x8xf32>
    %47 = math.exp %46 : vector<8x8xf32>
    %cst_23 = arith.constant dense<0.000000e+00> : vector<8xf32>
    %48 = vector.multi_reduction <add>, %47, %cst_23 [1] : vector<8x8xf32> to vector<8xf32>
    %49 = vector.shape_cast %48 : vector<8xf32> to vector<8x1xf32>
    %50 = vector.broadcast %49 : vector<8x1xf32> to vector<8x8xf32>
    %51 = arith.divf %47, %50 : vector<8x8xf32>
    %cst_24 = arith.constant dense<0.000000e+00> : vector<8x32xf32>
    %52 = tpu.matmul %51, %37, %cst_24 {dimension_numbers = #tpu.dot_dimension_numbers<[1], [0], [0], [1], [0, 0, 1, 1], [], []>} : vector<8x8xf32>, vector<8x32xf32>, vector<8x32xf32> -> vector<8x32xf32>
    %53 = arith.addf %34, %52 : vector<8x32xf32>
    %54 = vector.extract_strided_slice %5 {offsets = [0, 32], sizes = [8, 8], strides = [1, 1]} : vector<16x64xf32> to vector<8x8xf32>
    %55 = vector.extract_strided_slice %5 {offsets = [0, 40], sizes = [8, 8], strides = [1, 1]} : vector<16x64xf32> to vector<8x8xf32>
    %56 = vector.extract_strided_slice %10 {offsets = [0, 64], sizes = [8, 32], strides = [1, 1]} : vector<16x128xf32> to vector<8x32xf32>
    %cst_25 = arith.constant dense<0.000000e+00> : vector<8x8xf32>
    %57 = tpu.matmul %54, %55, %cst_25 {dimension_numbers = #tpu.dot_dimension_numbers<[1], [1], [0], [0], [0, 0, 1, 0], [], []>} : vector<8x8xf32>, vector<8x8xf32>, vector<8x8xf32> -> vector<8x8xf32>
    %cst_26 = arith.constant 0.353553385 : f32
    %58 = vector.broadcast %cst_26 : f32 to vector<8x8xf32>
    %59 = arith.mulf %57, %58 : vector<8x8xf32>
    %cst_27 = arith.constant -1.000000e+30 : f32
    %60 = vector.broadcast %cst_27 : f32 to vector<8x8xf32>
    %61 = arith.select %13, %60, %59 : vector<8x8xi1>, vector<8x8xf32>
    %cst_28 = arith.constant dense<0xFF800000> : vector<8xf32>
    %62 = vector.multi_reduction <maximumf>, %61, %cst_28 [1] : vector<8x8xf32> to vector<8xf32>
    %63 = vector.shape_cast %62 : vector<8xf32> to vector<8x1xf32>
    %64 = vector.broadcast %63 : vector<8x1xf32> to vector<8x8xf32>
    %65 = arith.subf %61, %64 : vector<8x8xf32>
    %66 = math.exp %65 : vector<8x8xf32>
    %cst_29 = arith.constant dense<0.000000e+00> : vector<8xf32>
    %67 = vector.multi_reduction <add>, %66, %cst_29 [1] : vector<8x8xf32> to vector<8xf32>
    %68 = vector.shape_cast %67 : vector<8xf32> to vector<8x1xf32>
    %69 = vector.broadcast %68 : vector<8x1xf32> to vector<8x8xf32>
    %70 = arith.divf %66, %69 : vector<8x8xf32>
    %cst_30 = arith.constant dense<0.000000e+00> : vector<8x32xf32>
    %71 = tpu.matmul %70, %56, %cst_30 {dimension_numbers = #tpu.dot_dimension_numbers<[1], [0], [0], [1], [0, 0, 1, 1], [], []>} : vector<8x8xf32>, vector<8x32xf32>, vector<8x32xf32> -> vector<8x32xf32>
    %72 = arith.addf %53, %71 : vector<8x32xf32>
    %73 = vector.extract_strided_slice %5 {offsets = [0, 48], sizes = [8, 8], strides = [1, 1]} : vector<16x64xf32> to vector<8x8xf32>
    %74 = vector.extract_strided_slice %5 {offsets = [0, 56], sizes = [8, 8], strides = [1, 1]} : vector<16x64xf32> to vector<8x8xf32>
    %75 = vector.extract_strided_slice %10 {offsets = [0, 96], sizes = [8, 32], strides = [1, 1]} : vector<16x128xf32> to vector<8x32xf32>
    %cst_31 = arith.constant dense<0.000000e+00> : vector<8x8xf32>
    %76 = tpu.matmul %73, %74, %cst_31 {dimension_numbers = #tpu.dot_dimension_numbers<[1], [1], [0], [0], [0, 0, 1, 0], [], []>} : vector<8x8xf32>, vector<8x8xf32>, vector<8x8xf32> -> vector<8x8xf32>
    %cst_32 = arith.constant 0.353553385 : f32
    %77 = vector.broadcast %cst_32 : f32 to vector<8x8xf32>
    %78 = arith.mulf %76, %77 : vector<8x8xf32>
    %cst_33 = arith.constant -1.000000e+30 : f32
    %79 = vector.broadcast %cst_33 : f32 to vector<8x8xf32>
    %80 = arith.select %13, %79, %78 : vector<8x8xi1>, vector<8x8xf32>
    %cst_34 = arith.constant dense<0xFF800000> : vector<8xf32>
    %81 = vector.multi_reduction <maximumf>, %80, %cst_34 [1] : vector<8x8xf32> to vector<8xf32>
    %82 = vector.shape_cast %81 : vector<8xf32> to vector<8x1xf32>
    %83 = vector.broadcast %82 : vector<8x1xf32> to vector<8x8xf32>
    %84 = arith.subf %80, %83 : vector<8x8xf32>
    %85 = math.exp %84 : vector<8x8xf32>
    %cst_35 = arith.constant dense<0.000000e+00> : vector<8xf32>
    %86 = vector.multi_reduction <add>, %85, %cst_35 [1] : vector<8x8xf32> to vector<8xf32>
    %87 = vector.shape_cast %86 : vector<8xf32> to vector<8x1xf32>
    %88 = vector.broadcast %87 : vector<8x1xf32> to vector<8x8xf32>
    %89 = arith.divf %85, %88 : vector<8x8xf32>
    %cst_36 = arith.constant dense<0.000000e+00> : vector<8x32xf32>
    %90 = tpu.matmul %89, %75, %cst_36 {dimension_numbers = #tpu.dot_dimension_numbers<[1], [0], [0], [1], [0, 0, 1, 1], [], []>} : vector<8x8xf32>, vector<8x32xf32>, vector<8x32xf32> -> vector<8x32xf32>
    %91 = arith.addf %72, %90 : vector<8x32xf32>
    %92 = vector.broadcast %14 : vector<1x32xf32> to vector<8x32xf32>
    %93 = arith.addf %91, %92 : vector<8x32xf32>
    %c0_37 = arith.constant 0 : index
    %c0_38 = arith.constant 0 : index
    %94 = vector.load %arg7[%c0_37, %c0_38] : memref<16x32xf32, #tpu.memory_space<vmem>>, vector<8x32xf32>
    tpu.vector_store %arg7[%c0_37, %c0_38], %93 {strides = array<i32>} : memref<16x32xf32, #tpu.memory_space<vmem>>, vector<8x32xf32>,
    %cst_39 = arith.constant 0.000000e+00 : f32
    %95 = vector.broadcast %cst_39 : f32 to vector<8x32xf32>
    %96 = vector.extract_strided_slice %5 {offsets = [8, 0], sizes = [8, 8], strides = [1, 1]} : vector<16x64xf32> to vector<8x8xf32>
    %97 = vector.extract_strided_slice %5 {offsets = [8, 8], sizes = [8, 8], strides = [1, 1]} : vector<16x64xf32> to vector<8x8xf32>
    %98 = vector.extract_strided_slice %10 {offsets = [8, 0], sizes = [8, 32], strides = [1, 1]} : vector<16x128xf32> to vector<8x32xf32>
    %cst_40 = arith.constant dense<0.000000e+00> : vector<8x8xf32>
    %99 = tpu.matmul %96, %97, %cst_40 {dimension_numbers = #tpu.dot_dimension_numbers<[1], [1], [0], [0], [0, 0, 1, 0], [], []>} : vector<8x8xf32>, vector<8x8xf32>, vector<8x8xf32> -> vector<8x8xf32>
    %cst_41 = arith.constant 0.353553385 : f32
    %100 = vector.broadcast %cst_41 : f32 to vector<8x8xf32>
    %101 = arith.mulf %99, %100 : vector<8x8xf32>
    %cst_42 = arith.constant -1.000000e+30 : f32
    %102 = vector.broadcast %cst_42 : f32 to vector<8x8xf32>
    %103 = arith.select %13, %102, %101 : vector<8x8xi1>, vector<8x8xf32>
    %cst_43 = arith.constant dense<0xFF800000> : vector<8xf32>
    %104 = vector.multi_reduction <maximumf>, %103, %cst_43 [1] : vector<8x8xf32> to vector<8xf32>
    %105 = vector.shape_cast %104 : vector<8xf32> to vector<8x1xf32>
    %106 = vector.broadcast %105 : vector<8x1xf32> to vector<8x8xf32>
    %107 = arith.subf %103, %106 : vector<8x8xf32>
    %108 = math.exp %107 : vector<8x8xf32>
    %cst_44 = arith.constant dense<0.000000e+00> : vector<8xf32>
    %109 = vector.multi_reduction <add>, %108, %cst_44 [1] : vector<8x8xf32> to vector<8xf32>
    %110 = vector.shape_cast %109 : vector<8xf32> to vector<8x1xf32>
    %111 = vector.broadcast %110 : vector<8x1xf32> to vector<8x8xf32>
    %112 = arith.divf %108, %111 : vector<8x8xf32>
    %cst_45 = arith.constant dense<0.000000e+00> : vector<8x32xf32>
    %113 = tpu.matmul %112, %98, %cst_45 {dimension_numbers = #tpu.dot_dimension_numbers<[1], [0], [0], [1], [0, 0, 1, 1], [], []>} : vector<8x8xf32>, vector<8x32xf32>, vector<8x32xf32> -> vector<8x32xf32>
    %114 = arith.addf %95, %113 : vector<8x32xf32>
    %115 = vector.extract_strided_slice %5 {offsets = [8, 16], sizes = [8, 8], strides = [1, 1]} : vector<16x64xf32> to vector<8x8xf32>
    %116 = vector.extract_strided_slice %5 {offsets = [8, 24], sizes = [8, 8], strides = [1, 1]} : vector<16x64xf32> to vector<8x8xf32>
    %117 = vector.extract_strided_slice %10 {offsets = [8, 32], sizes = [8, 32], strides = [1, 1]} : vector<16x128xf32> to vector<8x32xf32>
    %cst_46 = arith.constant dense<0.000000e+00> : vector<8x8xf32>
    %118 = tpu.matmul %115, %116, %cst_46 {dimension_numbers = #tpu.dot_dimension_numbers<[1], [1], [0], [0], [0, 0, 1, 0], [], []>} : vector<8x8xf32>, vector<8x8xf32>, vector<8x8xf32> -> vector<8x8xf32>
    %cst_47 = arith.constant 0.353553385 : f32
    %119 = vector.broadcast %cst_47 : f32 to vector<8x8xf32>
    %120 = arith.mulf %118, %119 : vector<8x8xf32>
    %cst_48 = arith.constant -1.000000e+30 : f32
    %121 = vector.broadcast %cst_48 : f32 to vector<8x8xf32>
    %122 = arith.select %13, %121, %120 : vector<8x8xi1>, vector<8x8xf32>
    %cst_49 = arith.constant dense<0xFF800000> : vector<8xf32>
    %123 = vector.multi_reduction <maximumf>, %122, %cst_49 [1] : vector<8x8xf32> to vector<8xf32>
    %124 = vector.shape_cast %123 : vector<8xf32> to vector<8x1xf32>
    %125 = vector.broadcast %124 : vector<8x1xf32> to vector<8x8xf32>
    %126 = arith.subf %122, %125 : vector<8x8xf32>
    %127 = math.exp %126 : vector<8x8xf32>
    %cst_50 = arith.constant dense<0.000000e+00> : vector<8xf32>
    %128 = vector.multi_reduction <add>, %127, %cst_50 [1] : vector<8x8xf32> to vector<8xf32>
    %129 = vector.shape_cast %128 : vector<8xf32> to vector<8x1xf32>
    %130 = vector.broadcast %129 : vector<8x1xf32> to vector<8x8xf32>
    %131 = arith.divf %127, %130 : vector<8x8xf32>
    %cst_51 = arith.constant dense<0.000000e+00> : vector<8x32xf32>
    %132 = tpu.matmul %131, %117, %cst_51 {dimension_numbers = #tpu.dot_dimension_numbers<[1], [0], [0], [1], [0, 0, 1, 1], [], []>} : vector<8x8xf32>, vector<8x32xf32>, vector<8x32xf32> -> vector<8x32xf32>
    %133 = arith.addf %114, %132 : vector<8x32xf32>
    %134 = vector.extract_strided_slice %5 {offsets = [8, 32], sizes = [8, 8], strides = [1, 1]} : vector<16x64xf32> to vector<8x8xf32>
    %135 = vector.extract_strided_slice %5 {offsets = [8, 40], sizes = [8, 8], strides = [1, 1]} : vector<16x64xf32> to vector<8x8xf32>
    %136 = vector.extract_strided_slice %10 {offsets = [8, 64], sizes = [8, 32], strides = [1, 1]} : vector<16x128xf32> to vector<8x32xf32>
    %cst_52 = arith.constant dense<0.000000e+00> : vector<8x8xf32>
    %137 = tpu.matmul %134, %135, %cst_52 {dimension_numbers = #tpu.dot_dimension_numbers<[1], [1], [0], [0], [0, 0, 1, 0], [], []>} : vector<8x8xf32>, vector<8x8xf32>, vector<8x8xf32> -> vector<8x8xf32>
    %cst_53 = arith.constant 0.353553385 : f32
    %138 = vector.broadcast %cst_53 : f32 to vector<8x8xf32>
    %139 = arith.mulf %137, %138 : vector<8x8xf32>
    %cst_54 = arith.constant -1.000000e+30 : f32
    %140 = vector.broadcast %cst_54 : f32 to vector<8x8xf32>
    %141 = arith.select %13, %140, %139 : vector<8x8xi1>, vector<8x8xf32>
    %cst_55 = arith.constant dense<0xFF800000> : vector<8xf32>
    %142 = vector.multi_reduction <maximumf>, %141, %cst_55 [1] : vector<8x8xf32> to vector<8xf32>
    %143 = vector.shape_cast %142 : vector<8xf32> to vector<8x1xf32>
    %144 = vector.broadcast %143 : vector<8x1xf32> to vector<8x8xf32>
    %145 = arith.subf %141, %144 : vector<8x8xf32>
    %146 = math.exp %145 : vector<8x8xf32>
    %cst_56 = arith.constant dense<0.000000e+00> : vector<8xf32>
    %147 = vector.multi_reduction <add>, %146, %cst_56 [1] : vector<8x8xf32> to vector<8xf32>
    %148 = vector.shape_cast %147 : vector<8xf32> to vector<8x1xf32>
    %149 = vector.broadcast %148 : vector<8x1xf32> to vector<8x8xf32>
    %150 = arith.divf %146, %149 : vector<8x8xf32>
    %cst_57 = arith.constant dense<0.000000e+00> : vector<8x32xf32>
    %151 = tpu.matmul %150, %136, %cst_57 {dimension_numbers = #tpu.dot_dimension_numbers<[1], [0], [0], [1], [0, 0, 1, 1], [], []>} : vector<8x8xf32>, vector<8x32xf32>, vector<8x32xf32> -> vector<8x32xf32>
    %152 = arith.addf %133, %151 : vector<8x32xf32>
    %153 = vector.extract_strided_slice %5 {offsets = [8, 48], sizes = [8, 8], strides = [1, 1]} : vector<16x64xf32> to vector<8x8xf32>
    %154 = vector.extract_strided_slice %5 {offsets = [8, 56], sizes = [8, 8], strides = [1, 1]} : vector<16x64xf32> to vector<8x8xf32>
    %155 = vector.extract_strided_slice %10 {offsets = [8, 96], sizes = [8, 32], strides = [1, 1]} : vector<16x128xf32> to vector<8x32xf32>
    %cst_58 = arith.constant dense<0.000000e+00> : vector<8x8xf32>
    %156 = tpu.matmul %153, %154, %cst_58 {dimension_numbers = #tpu.dot_dimension_numbers<[1], [1], [0], [0], [0, 0, 1, 0], [], []>} : vector<8x8xf32>, vector<8x8xf32>, vector<8x8xf32> -> vector<8x8xf32>
    %cst_59 = arith.constant 0.353553385 : f32
    %157 = vector.broadcast %cst_59 : f32 to vector<8x8xf32>
    %158 = arith.mulf %156, %157 : vector<8x8xf32>
    %cst_60 = arith.constant -1.000000e+30 : f32
    %159 = vector.broadcast %cst_60 : f32 to vector<8x8xf32>
    %160 = arith.select %13, %159, %158 : vector<8x8xi1>, vector<8x8xf32>
    %cst_61 = arith.constant dense<0xFF800000> : vector<8xf32>
    %161 = vector.multi_reduction <maximumf>, %160, %cst_61 [1] : vector<8x8xf32> to vector<8xf32>
    %162 = vector.shape_cast %161 : vector<8xf32> to vector<8x1xf32>
    %163 = vector.broadcast %162 : vector<8x1xf32> to vector<8x8xf32>
    %164 = arith.subf %160, %163 : vector<8x8xf32>
    %165 = math.exp %164 : vector<8x8xf32>
    %cst_62 = arith.constant dense<0.000000e+00> : vector<8xf32>
    %166 = vector.multi_reduction <add>, %165, %cst_62 [1] : vector<8x8xf32> to vector<8xf32>
    %167 = vector.shape_cast %166 : vector<8xf32> to vector<8x1xf32>
    %168 = vector.broadcast %167 : vector<8x1xf32> to vector<8x8xf32>
    %169 = arith.divf %165, %168 : vector<8x8xf32>
    %cst_63 = arith.constant dense<0.000000e+00> : vector<8x32xf32>
    %170 = tpu.matmul %169, %155, %cst_63 {dimension_numbers = #tpu.dot_dimension_numbers<[1], [0], [0], [1], [0, 0, 1, 1], [], []>} : vector<8x8xf32>, vector<8x32xf32>, vector<8x32xf32> -> vector<8x32xf32>
    %171 = arith.addf %152, %170 : vector<8x32xf32>
    %172 = vector.broadcast %14 : vector<1x32xf32> to vector<8x32xf32>
    %173 = arith.addf %171, %172 : vector<8x32xf32>
    %c8 = arith.constant 8 : index
    %c0_64 = arith.constant 0 : index
    %174 = vector.load %arg7[%c8, %c0_64] : memref<16x32xf32, #tpu.memory_space<vmem>>, vector<8x32xf32>
    tpu.vector_store %arg7[%c8, %c0_64], %173 {strides = array<i32>} : memref<16x32xf32, #tpu.memory_space<vmem>>, vector<8x32xf32>,
    return
  }
  func.func @transform_0(%arg0: i32) -> (i32, i32) {
    %c0_i32 = arith.constant 0 : i32
    %c0_i32_0 = arith.constant 0 : i32
    %c0_i32_1 = arith.constant 0 : i32
    return %c0_i32, %c0_i32_0 : i32, i32
  }
  func.func @transform_1(%arg0: i32) -> (i32, i32) {
    %c0_i32 = arith.constant 0 : i32
    %c0_i32_0 = arith.constant 0 : i32
    %c0_i32_1 = arith.constant 0 : i32
    return %c0_i32, %c0_i32_0 : i32, i32
  }
  func.func @transform_2(%arg0: i32) -> (i32, i32) {
    %c0_i32 = arith.constant 0 : i32
    %c0_i32_0 = arith.constant 0 : i32
    %c0_i32_1 = arith.constant 0 : i32
    return %c0_i32, %c0_i32_0 : i32, i32
  }
  func.func @transform_3(%arg0: i32) -> (i32, i32) {
    %c0_i32 = arith.constant 0 : i32
    %c0_i32_0 = arith.constant 0 : i32
    %c0_i32_1 = arith.constant 0 : i32
    return %c0_i32, %c0_i32_0 : i32, i32
  }
  func.func @transform_4(%arg0: i32) -> (i32, i32) {
    %c0_i32 = arith.constant 0 : i32
    %c0_i32_0 = arith.constant 0 : i32
    %c0_i32_1 = arith.constant 0 : i32
    return %c0_i32, %c0_i32_0 : i32, i32
  }
  func.func @transform_5(%arg0: i32) -> (i32, i32) {
    %c0_i32 = arith.constant 0 : i32
    %c0_i32_0 = arith.constant 0 : i32
    %c0_i32_1 = arith.constant 0 : i32
    return %c0_i32, %c0_i32_0 : i32, i32
  }
  func.func @transform_6(%arg0: i32) -> (i32, i32) {
    %c0_i32 = arith.constant 0 : i32
    %c0_i32_0 = arith.constant 0 : i32
    %c0_i32_1 = arith.constant 0 : i32
    return %c0_i32, %c0_i32_0 : i32, i32
  }
}

</mosaic_0001>

<llo_original>
// kernel: tpu_custom_call.1
$region0: #{tpu_custom_call.1}
  #allocation0 [shape = 'u32[]', space=smem, size = 0x4, offset = 0x4, fixed_abs, tag = 'smem constant byte address 0x4 - core index']
  #allocation1 [shape = 'u32[72,128]{1,0:T(1,128)}', space=vmem, size = 0x9000, scoped, tag = 'internal scratch']
  %s0 = inlined_call_operand.hbm [shape: f32[16,32], index: 0, kind: input, shape index: {}]
  %s1 = inlined_call_operand.hbm [shape: f32[32,64], index: 1, kind: input, shape index: {}]
  %s2 = inlined_call_operand.vmem [shape: f32[1,64], index: 2, kind: input, shape index: {}]
  %s3 = inlined_call_operand.hbm [shape: f32[32,128], index: 3, kind: input, shape index: {}]
  %s4 = inlined_call_operand.vmem [shape: f32[1,128], index: 4, kind: input, shape index: {}]
  %s5 = inlined_call_operand.vmem [shape: f32[1,32], index: 5, kind: input, shape index: {}]
  %s6 = inlined_call_operand.hbm [shape: f32[16,32], index: 6, kind: output, shape index: {}]
  %s7 = sld [smem:[#allocation0]]
  $region46: #{tpu_custom_call.1} parent=0
    _
  %s9 = ssub.s32 1, %s7
  %s10 = scalar_select 0, %s9, %s7
  $region1: #{tpu_custom_call.1} parent=0
    #allocation2 [shape = 'u8[8192]{0}', space=vmem, size = 0x2000, scoped, tag = 'input window, operand 0, single buffered']
    #allocation3 [shape = 's32[1]{0}', space=sflag, size = 0x4, scoped, tag = 'scoped memory for tpu_custom_call.1']
    #allocation4 [shape = 's32[1]{0}', space=sflag, size = 0x4, scoped, tag = 'scoped memory for tpu_custom_call.1']
    #allocation5 [shape = 'u8[16384]{0}', space=vmem, size = 0x4000, scoped, tag = 'input window, operand 1, single buffered']
    #allocation6 [shape = 's32[1]{0}', space=sflag, size = 0x4, scoped, tag = 'scoped memory for tpu_custom_call.1']
    #allocation7 [shape = 'u8[16384]{0}', space=vmem, size = 0x4000, scoped, tag = 'input window, operand 3, single buffered']
    #allocation8 [shape = 'u8[8192]{0}', space=vmem, size = 0x2000, scoped, tag = 'output window, operand 0, single buffered']
    %11 = vsyncpa [#allocation3], 0
    %12 = vsyncpa [#allocation6], 0
    %13 = vsyncpa [#allocation4], 0
    // Predicated region
    $region2: #{tpu_custom_call.1} parent=1 // pred_check
      _
    $region3: #{tpu_custom_call.1} parent=1 // pred_check_branch
      %15 = sbr.rel (0) target = $region5
    $region4: #{tpu_custom_call.1} parent=1 // pred_region
      %17 = vsyncadd [#allocation3], 0
      %s18 = sshll.u32 %s0, 4
      %s19 = int_to_ptr.hbm [resolvable:$true] %s18
      %s20 = sshll.u32 [#allocation2], 4
      %s21 = int_to_ptr.vmem [resolvable:$true] %s20
      %26 = dma.hbm_to_vmem [thread:$0]  %s19, 256, %s21, [#allocation3], 128, 128, 8
    $region5: #{tpu_custom_call.1} parent=1 // pred_fallthru
      _
    // Predicated region
    $region6: #{tpu_custom_call.1} parent=1 // pred_check
      _
    $region7: #{tpu_custom_call.1} parent=1 // pred_check_branch
      %28 = sbr.rel (0) target = $region9
    $region8: #{tpu_custom_call.1} parent=1 // pred_region
      %30 = vsyncadd [#allocation6], 0
      %s31 = sshll.u32 %s1, 4
      %s32 = int_to_ptr.hbm [resolvable:$true] %s31
      %s33 = sshll.u32 [#allocation5], 4
      %s34 = int_to_ptr.vmem [resolvable:$true] %s33
      %39 = dma.hbm_to_vmem [thread:$0]  %s32, 512, %s34, [#allocation6], 128, 128, 8
    $region9: #{tpu_custom_call.1} parent=1 // pred_fallthru
      _
    // Predicated region
    $region10: #{tpu_custom_call.1} parent=1 // pred_check
      _
    $region11: #{tpu_custom_call.1} parent=1 // pred_check_branch
      %41 = sbr.rel (0) target = $region13
    $region12: #{tpu_custom_call.1} parent=1 // pred_region
      _
    $region13: #{tpu_custom_call.1} parent=1 // pred_fallthru
      _
    // Predicated region
    $region14: #{tpu_custom_call.1} parent=1 // pred_check
      _
    $region15: #{tpu_custom_call.1} parent=1 // pred_check_branch
      %43 = sbr.rel (0) target = $region17
    $region16: #{tpu_custom_call.1} parent=1 // pred_region
      %45 = vsyncadd [#allocation6], 0
      %s46 = sshll.u32 %s3, 4
      %s47 = int_to_ptr.hbm [resolvable:$true] %s46
      %s48 = sshll.u32 [#allocation7], 4
      %s49 = int_to_ptr.vmem [resolvable:$true] %s48
      %54 = dma.hbm_to_vmem [thread:$0]  %s47, 512, %s49, [#allocation6], 128, 128, 8
    $region17: #{tpu_custom_call.1} parent=1 // pred_fallthru
      _
    // Predicated region
    $region18: #{tpu_custom_call.1} parent=1 // pred_check
      _
    $region19: #{tpu_custom_call.1} parent=1 // pred_check_branch
      %56 = sbr.rel (0) target = $region21
    $region20: #{tpu_custom_call.1} parent=1 // pred_region
      _
    $region21: #{tpu_custom_call.1} parent=1 // pred_fallthru
      _
    // Predicated region
    $region22: #{tpu_custom_call.1} parent=1 // pred_check
      _
    $region23: #{tpu_custom_call.1} parent=1 // pred_check_branch
      %58 = sbr.rel (0) target = $region25
    $region24: #{tpu_custom_call.1} parent=1 // pred_region
      _
    $region25: #{tpu_custom_call.1} parent=1 // pred_fallthru
      _
    // Predicated region
    $region26: #{tpu_custom_call.1} parent=1 // pred_check
      _
    $region27: #{tpu_custom_call.1} parent=1 // pred_check_branch
      %60 = sbr.rel (0) target = $region29
    $region28: #{tpu_custom_call.1} parent=1 // pred_region
      %62 = dma.done [#allocation3], 256
    $region29: #{tpu_custom_call.1} parent=1 // pred_fallthru
      _
    // Predicated region
    $region30: #{tpu_custom_call.1} parent=1 // pred_check
      _
    $region31: #{tpu_custom_call.1} parent=1 // pred_check_branch
      %64 = sbr.rel (0) target = $region33
    $region32: #{tpu_custom_call.1} parent=1 // pred_region
      %66 = dma.done [#allocation6], 512
    $region33: #{tpu_custom_call.1} parent=1 // pred_fallthru
      _
    // Predicated region
    $region34: #{tpu_custom_call.1} parent=1 // pred_check
      _
    $region35: #{tpu_custom_call.1} parent=1 // pred_check_branch
      %68 = sbr.rel (0) target = $region37
    $region36: #{tpu_custom_call.1} parent=1 // pred_region
      %70 = dma.done [#allocation6], 512
    $region37: #{tpu_custom_call.1} parent=1 // pred_fallthru
      _
    %v71 = vld [vmem:[#allocation2] sm:$0xff]
    %v72 = vld [vmem:[#allocation2 + $0x8] sm:$0xff]
    %v73 = vld [vmem:[#allocation5] sm:$0xff]
    %v74 = vld [vmem:[#allocation5 + $0x8] sm:$0xff]
    %v75 = vld [vmem:[#allocation5 + $0x10] sm:$0xff]
    %v76 = vld [vmem:[#allocation5 + $0x18] sm:$0xff]
    %v77 = vld [vmem:[%s2] sm:$0x1]
    %v79 = vperm.slane %v77, 0
    %vm81 = vcmask 261120
    %v83 = vsel %vm81, %v71, 0
    %v86 = vsel %vm81, %v72, 0
    %88 = vmatpush.msra.mxu0 0.0
    %89 = vmatpush.msra.mxu0 0.0
    %90 = vmatpush.msra.mxu0 0.0
    %91 = vmatpush.msra.mxu0 0.0
    %92 = vmatpush.msra.mxu0 0.0
    %93 = vmatpush.msra.mxu0 0.0
    %94 = vmatpush.msra.mxu0 0.0
    %95 = vmatpush.msra.mxu0 0.0
    %96 = vmatpush.msra.mxu0 0.0
    %97 = vmatpush.msra.mxu0 0.0
    %98 = vmatpush.msra.mxu0 0.0
    %99 = vmatpush.msra.mxu0 0.0
    %100 = vmatpush.msra.mxu0 %v76
    %101 = vmatpush.msra.mxu0 %v75
    %102 = vmatpush.msra.mxu0 %v74
    %103 = vmatpush.msra.mxu0 %v73
    %104 = vmatmul.f32.gmra.mxu0 %v83
    %v105 = vpop.f32.mrf.mxu0
    %v106 = vadd.f32 %v79, %v105
    %107 = vmatmul.f32.gmra.mxu0 %v86
    %v108 = vpop.f32.mrf.mxu0
    %v109 = vadd.f32 %v79, %v108
    %110 = vdwg.mxu0
    %v111 = vld [vmem:[#allocation7] sm:$0xff]
    %v112 = vld [vmem:[#allocation7 + $0x8] sm:$0xff]
    %v113 = vld [vmem:[#allocation7 + $0x10] sm:$0xff]
    %v114 = vld [vmem:[#allocation7 + $0x18] sm:$0xff]
    %v115 = vld [vmem:[%s4] sm:$0x1]
    %v117 = vperm.slane %v115, 0
    %119 = vmatpush.msra.mxu0 0.0
    %120 = vmatpush.msra.mxu0 0.0
    %121 = vmatpush.msra.mxu0 0.0
    %122 = vmatpush.msra.mxu0 0.0
    %123 = vmatpush.msra.mxu0 0.0
    %124 = vmatpush.msra.mxu0 0.0
    %125 = vmatpush.msra.mxu0 0.0
    %126 = vmatpush.msra.mxu0 0.0
    %127 = vmatpush.msra.mxu0 0.0
    %128 = vmatpush.msra.mxu0 0.0
    %129 = vmatpush.msra.mxu0 0.0
    %130 = vmatpush.msra.mxu0 0.0
    %131 = vmatpush.msra.mxu0 %v114
    %132 = vmatpush.msra.mxu0 %v113
    %133 = vmatpush.msra.mxu0 %v112
    %134 = vmatpush.msra.mxu0 %v111
    %135 = vmatmul.f32.gmra.mxu0 %v83
    %v136 = vpop.f32.mrf.mxu0
    %v137 = vadd.f32 %v117, %v136
    %138 = vmatmul.f32.gmra.mxu0 %v86
    %v139 = vpop.f32.mrf.mxu0
    %v140 = vadd.f32 %v117, %v139
    %141 = vdwg.mxu0
    %v142 = vlaneseq
    %v143 = vshrl.u32 %v142, 7
    %v144 = vlaneseq
    %v145 = vand.u32 %v144, 127
    %vm146 = vcmp.gt.s32.totalorder %v145, %v143
    %v147 = vld [vmem:[%s5] sm:$0x1]
    %149 = vrot.lane.b32.xlu0 %v106, 120
    %v150 = vpop.permute.xlu0 %149
    %vm151 = vcmask 64512
    %v152 = vsel %vm151, %v106, 0
    %v154 = vsel %vm151, %v150, 0
    %156 = vmatpush.xpose.msra.mxu0 0.0
    %157 = vmatpush.xpose.msra.mxu0 0.0
    %158 = vmatpush.xpose.msra.mxu0 0.0
    %159 = vmatpush.xpose.msra.mxu0 0.0
    %160 = vmatpush.xpose.msra.mxu0 0.0
    %161 = vmatpush.xpose.msra.mxu0 0.0
    %162 = vmatpush.xpose.msra.mxu0 0.0
    %163 = vmatpush.xpose.msra.mxu0 0.0
    %164 = vmatpush.xpose.msra.mxu0 0.0
    %165 = vmatpush.xpose.msra.mxu0 0.0
    %166 = vmatpush.xpose.msra.mxu0 0.0
    %167 = vmatpush.xpose.msra.mxu0 0.0
    %168 = vmatpush.xpose.msra.mxu0 0.0
    %169 = vmatpush.xpose.msra.mxu0 0.0
    %170 = vmatpush.xpose.msra.mxu0 0.0
    %171 = vmatpush.xpose.msra.mxu0 %v154
    %172 = vmatmul.f32.gmra.mxu0 %v152
    %v173 = vpop.f32.mrf.mxu0
    %v174 = vadd.f32 0.0, %v173
    %175 = vdwg.mxu0
    %v176 = vmul.f32 %v174, 0.35355338
    %v177 = vsel %vm146, -1e+30, %v176
    %v178 = vsel %vm151, %v177, -inf
    %179 = vmax.xlane.f32.xlu0 %v178
    %v180 = vpop.xlane.xlu0 %179
    %v181 = vsub.f32 %v177, %v180
    %v182 = vmul.f32 %v181, 1.442695
    %v183 = vpow.pop %v182
    %v184 = vsel %vm151, %v183, 0.0
    %185 = vadd.xlane.f32.xlu0 %v184
    %v186 = vpop.xlane.xlu0 %185
    %v187 = vrcp.pop %v186
    %v188 = vmul.f32 %v186, %v187
    %v189 = vsub.f32 1.0, %v188
    %v190 = vmul.f32 %v187, %v189
    %v191 = vadd.f32 %v187, %v190
    %vm192 = vweird.f32 %v186
    %vm193 = vweird.f32 %v187
    %vm194 = vmor %vm192, %vm193
    %v195 = vsel %vm194, %v187, %v191
    %v196 = vand.u32 2147483647, %v186
    %vm197 = vcmp.eq.f32.partialorder %v196, 8.507059e+37
    %v198 = vand.u32 %v186, 2147483648
    %v199 = vor.u32 1.1754944e-38, %v198
    %v200 = vsel %vm197, %v199, %v195
    %v201 = vmul.f32 %v183, %v200
    %202 = vrot.lane.b32.xlu0 %v106, 112
    %v203 = vpop.permute.xlu0 %202
    %204 = vrot.lane.b32.xlu0 %v106, 104
    %v205 = vpop.permute.xlu0 %204
    %v206 = vsel %vm151, %v203, 0
    %v208 = vsel %vm151, %v205, 0
    %210 = vmatpush.xpose.msra.mxu0 0.0
    %211 = vmatpush.xpose.msra.mxu0 0.0
    %212 = vmatpush.xpose.msra.mxu0 0.0
    %213 = vmatpush.xpose.msra.mxu0 0.0
    %214 = vmatpush.xpose.msra.mxu0 0.0
    %215 = vmatpush.xpose.msra.mxu0 0.0
    %216 = vmatpush.xpose.msra.mxu0 0.0
    %217 = vmatpush.xpose.msra.mxu0 0.0
    %218 = vmatpush.xpose.msra.mxu0 0.0
    %219 = vmatpush.xpose.msra.mxu0 0.0
    %220 = vmatpush.xpose.msra.mxu0 0.0
    %221 = vmatpush.xpose.msra.mxu0 0.0
    %222 = vmatpush.xpose.msra.mxu0 0.0
    %223 = vmatpush.xpose.msra.mxu0 0.0
    %224 = vmatpush.xpose.msra.mxu0 0.0
    %225 = vmatpush.xpose.msra.mxu0 %v208
    %226 = vmatmul.f32.gmra.mxu0 %v206
    %v227 = vpop.f32.mrf.mxu0
    %v228 = vadd.f32 0.0, %v227
    %229 = vdwg.mxu0
    %v230 = vmul.f32 %v228, 0.35355338
    %v231 = vsel %vm146, -1e+30, %v230
    %v232 = vsel %vm151, %v231, -inf
    %233 = vmax.xlane.f32.xlu0 %v232
    %v234 = vpop.xlane.xlu0 %233
    %v235 = vsub.f32 %v231, %v234
    %v236 = vmul.f32 %v235, 1.442695
    %v237 = vpow.pop %v236
    %v238 = vsel %vm151, %v237, 0.0
    %239 = vadd.xlane.f32.xlu0 %v238
    %v240 = vpop.xlane.xlu0 %239
    %v241 = vrcp.pop %v240
    %v242 = vmul.f32 %v240, %v241
    %v243 = vsub.f32 1.0, %v242
    %v244 = vmul.f32 %v241, %v243
    %v245 = vadd.f32 %v241, %v244
    %vm246 = vweird.f32 %v240
    %vm247 = vweird.f32 %v241
    %vm248 = vmor %vm246, %vm247
    %v249 = vsel %vm248, %v241, %v245
    %v250 = vand.u32 2147483647, %v240
    %vm251 = vcmp.eq.f32.partialorder %v250, 8.507059e+37
    %v252 = vand.u32 %v240, 2147483648
    %v253 = vor.u32 1.1754944e-38, %v252
    %v254 = vsel %vm251, %v253, %v249
    %v255 = vmul.f32 %v237, %v254
    %257 = vrot.lane.b32.xlu0 %v137, 96
    %v258 = vpop.permute.xlu0 %257
    %v261 = vsel %vm151, %v255, 0
    %263 = vmatpush.msra.mxu0 0.0
    %264 = vmatpush.msra.mxu0 0.0
    %265 = vmatpush.msra.mxu0 0.0
    %266 = vmatpush.msra.mxu0 0.0
    %267 = vmatpush.msra.mxu0 0.0
    %268 = vmatpush.msra.mxu0 0.0
    %269 = vmatpush.msra.mxu0 0.0
    %270 = vmatpush.msra.mxu0 0.0
    %271 = vmatpush.msra.mxu0 0.0
    %272 = vmatpush.msra.mxu0 0.0
    %273 = vmatpush.msra.mxu0 0.0
    %274 = vmatpush.msra.mxu0 0.0
    %275 = vmatpush.msra.mxu0 0.0
    %276 = vmatpush.msra.mxu0 0.0
    %277 = vmatpush.msra.mxu0 0.0
    %278 = vmatpush.msra.mxu0 %v258
    %279 = vmatmul.f32.gmra.mxu0 %v261
    %v280 = vpop.f32.mrf.mxu0
    %v281 = vadd.f32 0.0, %v280
    %282 = vdwg.mxu0
    %v284 = vsel %vm151, %v201, 0
    %286 = vmatpush.msra.mxu0 0.0
    %287 = vmatpush.msra.mxu0 0.0
    %288 = vmatpush.msra.mxu0 0.0
    %289 = vmatpush.msra.mxu0 0.0
    %290 = vmatpush.msra.mxu0 0.0
    %291 = vmatpush.msra.mxu0 0.0
    %292 = vmatpush.msra.mxu0 0.0
    %293 = vmatpush.msra.mxu0 0.0
    %294 = vmatpush.msra.mxu0 0.0
    %295 = vmatpush.msra.mxu0 0.0
    %296 = vmatpush.msra.mxu0 0.0
    %297 = vmatpush.msra.mxu0 0.0
    %298 = vmatpush.msra.mxu0 0.0
    %299 = vmatpush.msra.mxu0 0.0
    %300 = vmatpush.msra.mxu0 0.0
    %301 = vmatpush.msra.mxu0 %v137
    %302 = vmatmul.f32.gmra.mxu0 %v284
    %v303 = vpop.f32.mrf.mxu0
    %v304 = vadd.f32 %v281, %v303
    %305 = vdwg.mxu0
    %306 = vrot.lane.b32.xlu0 %v106, 96
    %v307 = vpop.permute.xlu0 %306
    %308 = vrot.lane.b32.xlu0 %v106, 88
    %v309 = vpop.permute.xlu0 %308
    %v310 = vsel %vm151, %v307, 0
    %v312 = vsel %vm151, %v309, 0
    %314 = vmatpush.xpose.msra.mxu0 0.0
    %315 = vmatpush.xpose.msra.mxu0 0.0
    %316 = vmatpush.xpose.msra.mxu0 0.0
    %317 = vmatpush.xpose.msra.mxu0 0.0
    %318 = vmatpush.xpose.msra.mxu0 0.0
    %319 = vmatpush.xpose.msra.mxu0 0.0
    %320 = vmatpush.xpose.msra.mxu0 0.0
    %321 = vmatpush.xpose.msra.mxu0 0.0
    %322 = vmatpush.xpose.msra.mxu0 0.0
    %323 = vmatpush.xpose.msra.mxu0 0.0
    %324 = vmatpush.xpose.msra.mxu0 0.0
    %325 = vmatpush.xpose.msra.mxu0 0.0
    %326 = vmatpush.xpose.msra.mxu0 0.0
    %327 = vmatpush.xpose.msra.mxu0 0.0
    %328 = vmatpush.xpose.msra.mxu0 0.0
    %329 = vmatpush.xpose.msra.mxu0 %v312
    %330 = vmatmul.f32.gmra.mxu0 %v310
    %v331 = vpop.f32.mrf.mxu0
    %v332 = vadd.f32 0.0, %v331
    %333 = vdwg.mxu0
    %v334 = vmul.f32 %v332, 0.35355338
    %v335 = vsel %vm146, -1e+30, %v334
    %v336 = vsel %vm151, %v335, -inf
    %337 = vmax.xlane.f32.xlu0 %v336
    %v338 = vpop.xlane.xlu0 %337
    %v339 = vsub.f32 %v335, %v338
    %v340 = vmul.f32 %v339, 1.442695
    %v341 = vpow.pop %v340
    %v342 = vsel %vm151, %v341, 0.0
    %343 = vadd.xlane.f32.xlu0 %v342
    %v344 = vpop.xlane.xlu0 %343
    %v345 = vrcp.pop %v344
    %v346 = vmul.f32 %v344, %v345
    %v347 = vsub.f32 1.0, %v346
    %v348 = vmul.f32 %v345, %v347
    %v349 = vadd.f32 %v345, %v348
    %vm350 = vweird.f32 %v344
    %vm351 = vweird.f32 %v345
    %vm352 = vmor %vm350, %vm351
    %v353 = vsel %vm352, %v345, %v349
    %v354 = vand.u32 2147483647, %v344
    %vm355 = vcmp.eq.f32.partialorder %v354, 8.507059e+37
    %v356 = vand.u32 %v344, 2147483648
    %v357 = vor.u32 1.1754944e-38, %v356
    %v358 = vsel %vm355, %v357, %v353
    %v359 = vmul.f32 %v341, %v358
    %360 = vrot.lane.b32.xlu0 %v137, 64
    %v361 = vpop.permute.xlu0 %360
    %v364 = vsel %vm151, %v359, 0
    %366 = vmatpush.msra.mxu0 0.0
    %367 = vmatpush.msra.mxu0 0.0
    %368 = vmatpush.msra.mxu0 0.0
    %369 = vmatpush.msra.mxu0 0.0
    %370 = vmatpush.msra.mxu0 0.0
    %371 = vmatpush.msra.mxu0 0.0
    %372 = vmatpush.msra.mxu0 0.0
    %373 = vmatpush.msra.mxu0 0.0
    %374 = vmatpush.msra.mxu0 0.0
    %375 = vmatpush.msra.mxu0 0.0
    %376 = vmatpush.msra.mxu0 0.0
    %377 = vmatpush.msra.mxu0 0.0
    %378 = vmatpush.msra.mxu0 0.0
    %379 = vmatpush.msra.mxu0 0.0
    %380 = vmatpush.msra.mxu0 0.0
    %381 = vmatpush.msra.mxu0 %v361
    %382 = vmatmul.f32.gmra.mxu0 %v364
    %v383 = vpop.f32.mrf.mxu0
    %v384 = vadd.f32 0.0, %v383
    %385 = vdwg.mxu0
    %v386 = vadd.f32 %v304, %v384
    %387 = vrot.lane.b32.xlu0 %v106, 80
    %v388 = vpop.permute.xlu0 %387
    %389 = vrot.lane.b32.xlu0 %v106, 72
    %v390 = vpop.permute.xlu0 %389
    %v391 = vsel %vm151, %v388, 0
    %v393 = vsel %vm151, %v390, 0
    %395 = vmatpush.xpose.msra.mxu0 0.0
    %396 = vmatpush.xpose.msra.mxu0 0.0
    %397 = vmatpush.xpose.msra.mxu0 0.0
    %398 = vmatpush.xpose.msra.mxu0 0.0
    %399 = vmatpush.xpose.msra.mxu0 0.0
    %400 = vmatpush.xpose.msra.mxu0 0.0
    %401 = vmatpush.xpose.msra.mxu0 0.0
    %402 = vmatpush.xpose.msra.mxu0 0.0
    %403 = vmatpush.xpose.msra.mxu0 0.0
    %404 = vmatpush.xpose.msra.mxu0 0.0
    %405 = vmatpush.xpose.msra.mxu0 0.0
    %406 = vmatpush.xpose.msra.mxu0 0.0
    %407 = vmatpush.xpose.msra.mxu0 0.0
    %408 = vmatpush.xpose.msra.mxu0 0.0
    %409 = vmatpush.xpose.msra.mxu0 0.0
    %410 = vmatpush.xpose.msra.mxu0 %v393
    %411 = vmatmul.f32.gmra.mxu0 %v391
    %v412 = vpop.f32.mrf.mxu0
    %v413 = vadd.f32 0.0, %v412
    %414 = vdwg.mxu0
    %v415 = vmul.f32 %v413, 0.35355338
    %v416 = vsel %vm146, -1e+30, %v415
    %v417 = vsel %vm151, %v416, -inf
    %418 = vmax.xlane.f32.xlu0 %v417
    %v419 = vpop.xlane.xlu0 %418
    %v420 = vsub.f32 %v416, %v419
    %v421 = vmul.f32 %v420, 1.442695
    %v422 = vpow.pop %v421
    %v423 = vsel %vm151, %v422, 0.0
    %424 = vadd.xlane.f32.xlu0 %v423
    %v425 = vpop.xlane.xlu0 %424
    %v426 = vrcp.pop %v425
    %v427 = vmul.f32 %v425, %v426
    %v428 = vsub.f32 1.0, %v427
    %v429 = vmul.f32 %v426, %v428
    %v430 = vadd.f32 %v426, %v429
    %vm431 = vweird.f32 %v425
    %vm432 = vweird.f32 %v426
    %vm433 = vmor %vm431, %vm432
    %v434 = vsel %vm433, %v426, %v430
    %v435 = vand.u32 2147483647, %v425
    %vm436 = vcmp.eq.f32.partialorder %v435, 8.507059e+37
    %v437 = vand.u32 %v425, 2147483648
    %v438 = vor.u32 1.1754944e-38, %v437
    %v439 = vsel %vm436, %v438, %v434
    %v440 = vmul.f32 %v422, %v439
    %441 = vrot.lane.b32.xlu0 %v137, 32
    %v442 = vpop.permute.xlu0 %441
    %v445 = vsel %vm151, %v440, 0
    %447 = vmatpush.msra.mxu0 0.0
    %448 = vmatpush.msra.mxu0 0.0
    %449 = vmatpush.msra.mxu0 0.0
    %450 = vmatpush.msra.mxu0 0.0
    %451 = vmatpush.msra.mxu0 0.0
    %452 = vmatpush.msra.mxu0 0.0
    %453 = vmatpush.msra.mxu0 0.0
    %454 = vmatpush.msra.mxu0 0.0
    %455 = vmatpush.msra.mxu0 0.0
    %456 = vmatpush.msra.mxu0 0.0
    %457 = vmatpush.msra.mxu0 0.0
    %458 = vmatpush.msra.mxu0 0.0
    %459 = vmatpush.msra.mxu0 0.0
    %460 = vmatpush.msra.mxu0 0.0
    %461 = vmatpush.msra.mxu0 0.0
    %462 = vmatpush.msra.mxu0 %v442
    %463 = vmatmul.f32.gmra.mxu0 %v445
    %v464 = vpop.f32.mrf.mxu0
    %v465 = vadd.f32 0.0, %v464
    %466 = vdwg.mxu0
    %v467 = vadd.f32 %v386, %v465
    %v469 = vperm.slane %v147, 0
    %v471 = vadd.f32 %v467, %v469
    %472 = vst.msk [vmem:[#allocation8] sm:$0xff] %vm81, %v471
    %474 = vrot.lane.b32.xlu0 %v109, 120
    %v475 = vpop.permute.xlu0 %474
    %v476 = vsel %vm151, %v109, 0
    %v478 = vsel %vm151, %v475, 0
    %480 = vmatpush.xpose.msra.mxu0 0.0
    %481 = vmatpush.xpose.msra.mxu0 0.0
    %482 = vmatpush.xpose.msra.mxu0 0.0
    %483 = vmatpush.xpose.msra.mxu0 0.0
    %484 = vmatpush.xpose.msra.mxu0 0.0
    %485 = vmatpush.xpose.msra.mxu0 0.0
    %486 = vmatpush.xpose.msra.mxu0 0.0
    %487 = vmatpush.xpose.msra.mxu0 0.0
    %488 = vmatpush.xpose.msra.mxu0 0.0
    %489 = vmatpush.xpose.msra.mxu0 0.0
    %490 = vmatpush.xpose.msra.mxu0 0.0
    %491 = vmatpush.xpose.msra.mxu0 0.0
    %492 = vmatpush.xpose.msra.mxu0 0.0
    %493 = vmatpush.xpose.msra.mxu0 0.0
    %494 = vmatpush.xpose.msra.mxu0 0.0
    %495 = vmatpush.xpose.msra.mxu0 %v478
    %496 = vmatmul.f32.gmra.mxu0 %v476
    %v497 = vpop.f32.mrf.mxu0
    %v498 = vadd.f32 0.0, %v497
    %499 = vdwg.mxu0
    %v500 = vmul.f32 %v498, 0.35355338
    %v501 = vsel %vm146, -1e+30, %v500
    %v502 = vsel %vm151, %v501, -inf
    %503 = vmax.xlane.f32.xlu0 %v502
    %v504 = vpop.xlane.xlu0 %503
    %v505 = vsub.f32 %v501, %v504
    %v506 = vmul.f32 %v505, 1.442695
    %v507 = vpow.pop %v506
    %v508 = vsel %vm151, %v507, 0.0
    %509 = vadd.xlane.f32.xlu0 %v508
    %v510 = vpop.xlane.xlu0 %509
    %v511 = vrcp.pop %v510
    %v512 = vmul.f32 %v510, %v511
    %v513 = vsub.f32 1.0, %v512
    %v514 = vmul.f32 %v511, %v513
    %v515 = vadd.f32 %v511, %v514
    %vm516 = vweird.f32 %v510
    %vm517 = vweird.f32 %v511
    %vm518 = vmor %vm516, %vm517
    %v519 = vsel %vm518, %v511, %v515
    %v520 = vand.u32 2147483647, %v510
    %vm521 = vcmp.eq.f32.partialorder %v520, 8.507059e+37
    %v522 = vand.u32 %v510, 2147483648
    %v523 = vor.u32 1.1754944e-38, %v522
    %v524 = vsel %vm521, %v523, %v519
    %v525 = vmul.f32 %v507, %v524
    %526 = vrot.lane.b32.xlu0 %v109, 112
    %v527 = vpop.permute.xlu0 %526
    %528 = vrot.lane.b32.xlu0 %v109, 104
    %v529 = vpop.permute.xlu0 %528
    %v530 = vsel %vm151, %v527, 0
    %v532 = vsel %vm151, %v529, 0
    %534 = vmatpush.xpose.msra.mxu0 0.0
    %535 = vmatpush.xpose.msra.mxu0 0.0
    %536 = vmatpush.xpose.msra.mxu0 0.0
    %537 = vmatpush.xpose.msra.mxu0 0.0
    %538 = vmatpush.xpose.msra.mxu0 0.0
    %539 = vmatpush.xpose.msra.mxu0 0.0
    %540 = vmatpush.xpose.msra.mxu0 0.0
    %541 = vmatpush.xpose.msra.mxu0 0.0
    %542 = vmatpush.xpose.msra.mxu0 0.0
    %543 = vmatpush.xpose.msra.mxu0 0.0
    %544 = vmatpush.xpose.msra.mxu0 0.0
    %545 = vmatpush.xpose.msra.mxu0 0.0
    %546 = vmatpush.xpose.msra.mxu0 0.0
    %547 = vmatpush.xpose.msra.mxu0 0.0
    %548 = vmatpush.xpose.msra.mxu0 0.0
    %549 = vmatpush.xpose.msra.mxu0 %v532
    %550 = vmatmul.f32.gmra.mxu0 %v530
    %v551 = vpop.f32.mrf.mxu0
    %v552 = vadd.f32 0.0, %v551
    %553 = vdwg.mxu0
    %v554 = vmul.f32 %v552, 0.35355338
    %v555 = vsel %vm146, -1e+30, %v554
    %v556 = vsel %vm151, %v555, -inf
    %557 = vmax.xlane.f32.xlu0 %v556
    %v558 = vpop.xlane.xlu0 %557
    %v559 = vsub.f32 %v555, %v558
    %v560 = vmul.f32 %v559, 1.442695
    %v561 = vpow.pop %v560
    %v562 = vsel %vm151, %v561, 0.0
    %563 = vadd.xlane.f32.xlu0 %v562
    %v564 = vpop.xlane.xlu0 %563
    %v565 = vrcp.pop %v564
    %v566 = vmul.f32 %v564, %v565
    %v567 = vsub.f32 1.0, %v566
    %v568 = vmul.f32 %v565, %v567
    %v569 = vadd.f32 %v565, %v568
    %vm570 = vweird.f32 %v564
    %vm571 = vweird.f32 %v565
    %vm572 = vmor %vm570, %vm571
    %v573 = vsel %vm572, %v565, %v569
    %v574 = vand.u32 2147483647, %v564
    %vm575 = vcmp.eq.f32.partialorder %v574, 8.507059e+37
    %v576 = vand.u32 %v564, 2147483648
    %v577 = vor.u32 1.1754944e-38, %v576
    %v578 = vsel %vm575, %v577, %v573
    %v579 = vmul.f32 %v561, %v578
    %581 = vrot.lane.b32.xlu0 %v140, 96
    %v582 = vpop.permute.xlu0 %581
    %v585 = vsel %vm151, %v579, 0
    %587 = vmatpush.msra.mxu0 0.0
    %588 = vmatpush.msra.mxu0 0.0
    %589 = vmatpush.msra.mxu0 0.0
    %590 = vmatpush.msra.mxu0 0.0
    %591 = vmatpush.msra.mxu0 0.0
    %592 = vmatpush.msra.mxu0 0.0
    %593 = vmatpush.msra.mxu0 0.0
    %594 = vmatpush.msra.mxu0 0.0
    %595 = vmatpush.msra.mxu0 0.0
    %596 = vmatpush.msra.mxu0 0.0
    %597 = vmatpush.msra.mxu0 0.0
    %598 = vmatpush.msra.mxu0 0.0
    %599 = vmatpush.msra.mxu0 0.0
    %600 = vmatpush.msra.mxu0 0.0
    %601 = vmatpush.msra.mxu0 0.0
    %602 = vmatpush.msra.mxu0 %v582
    %603 = vmatmul.f32.gmra.mxu0 %v585
    %v604 = vpop.f32.mrf.mxu0
    %v605 = vadd.f32 0.0, %v604
    %606 = vdwg.mxu0
    %v608 = vsel %vm151, %v525, 0
    %610 = vmatpush.msra.mxu0 0.0
    %611 = vmatpush.msra.mxu0 0.0
    %612 = vmatpush.msra.mxu0 0.0
    %613 = vmatpush.msra.mxu0 0.0
    %614 = vmatpush.msra.mxu0 0.0
    %615 = vmatpush.msra.mxu0 0.0
    %616 = vmatpush.msra.mxu0 0.0
    %617 = vmatpush.msra.mxu0 0.0
    %618 = vmatpush.msra.mxu0 0.0
    %619 = vmatpush.msra.mxu0 0.0
    %620 = vmatpush.msra.mxu0 0.0
    %621 = vmatpush.msra.mxu0 0.0
    %622 = vmatpush.msra.mxu0 0.0
    %623 = vmatpush.msra.mxu0 0.0
    %624 = vmatpush.msra.mxu0 0.0
    %625 = vmatpush.msra.mxu0 %v140
    %626 = vmatmul.f32.gmra.mxu0 %v608
    %v627 = vpop.f32.mrf.mxu0
    %v628 = vadd.f32 %v605, %v627
    %629 = vdwg.mxu0
    %630 = vrot.lane.b32.xlu0 %v109, 96
    %v631 = vpop.permute.xlu0 %630
    %632 = vrot.lane.b32.xlu0 %v109, 88
    %v633 = vpop.permute.xlu0 %632
    %v634 = vsel %vm151, %v631, 0
    %v636 = vsel %vm151, %v633, 0
    %638 = vmatpush.xpose.msra.mxu0 0.0
    %639 = vmatpush.xpose.msra.mxu0 0.0
    %640 = vmatpush.xpose.msra.mxu0 0.0
    %641 = vmatpush.xpose.msra.mxu0 0.0
    %642 = vmatpush.xpose.msra.mxu0 0.0
    %643 = vmatpush.xpose.msra.mxu0 0.0
    %644 = vmatpush.xpose.msra.mxu0 0.0
    %645 = vmatpush.xpose.msra.mxu0 0.0
    %646 = vmatpush.xpose.msra.mxu0 0.0
    %647 = vmatpush.xpose.msra.mxu0 0.0
    %648 = vmatpush.xpose.msra.mxu0 0.0
    %649 = vmatpush.xpose.msra.mxu0 0.0
    %650 = vmatpush.xpose.msra.mxu0 0.0
    %651 = vmatpush.xpose.msra.mxu0 0.0
    %652 = vmatpush.xpose.msra.mxu0 0.0
    %653 = vmatpush.xpose.msra.mxu0 %v636
    %654 = vmatmul.f32.gmra.mxu0 %v634
    %v655 = vpop.f32.mrf.mxu0
    %v656 = vadd.f32 0.0, %v655
    %657 = vdwg.mxu0
    %v658 = vmul.f32 %v656, 0.35355338
    %v659 = vsel %vm146, -1e+30, %v658
    %v660 = vsel %vm151, %v659, -inf
    %661 = vmax.xlane.f32.xlu0 %v660
    %v662 = vpop.xlane.xlu0 %661
    %v663 = vsub.f32 %v659, %v662
    %v664 = vmul.f32 %v663, 1.442695
    %v665 = vpow.pop %v664
    %v666 = vsel %vm151, %v665, 0.0
    %667 = vadd.xlane.f32.xlu0 %v666
    %v668 = vpop.xlane.xlu0 %667
    %v669 = vrcp.pop %v668
    %v670 = vmul.f32 %v668, %v669
    %v671 = vsub.f32 1.0, %v670
    %v672 = vmul.f32 %v669, %v671
    %v673 = vadd.f32 %v669, %v672
    %vm674 = vweird.f32 %v668
    %vm675 = vweird.f32 %v669
    %vm676 = vmor %vm674, %vm675
    %v677 = vsel %vm676, %v669, %v673
    %v678 = vand.u32 2147483647, %v668
    %vm679 = vcmp.eq.f32.partialorder %v678, 8.507059e+37
    %v680 = vand.u32 %v668, 2147483648
    %v681 = vor.u32 1.1754944e-38, %v680
    %v682 = vsel %vm679, %v681, %v677
    %v683 = vmul.f32 %v665, %v682
    %684 = vrot.lane.b32.xlu0 %v140, 64
    %v685 = vpop.permute.xlu0 %684
    %v688 = vsel %vm151, %v683, 0
    %690 = vmatpush.msra.mxu0 0.0
    %691 = vmatpush.msra.mxu0 0.0
    %692 = vmatpush.msra.mxu0 0.0
    %693 = vmatpush.msra.mxu0 0.0
    %694 = vmatpush.msra.mxu0 0.0
    %695 = vmatpush.msra.mxu0 0.0
    %696 = vmatpush.msra.mxu0 0.0
    %697 = vmatpush.msra.mxu0 0.0
    %698 = vmatpush.msra.mxu0 0.0
    %699 = vmatpush.msra.mxu0 0.0
    %700 = vmatpush.msra.mxu0 0.0
    %701 = vmatpush.msra.mxu0 0.0
    %702 = vmatpush.msra.mxu0 0.0
    %703 = vmatpush.msra.mxu0 0.0
    %704 = vmatpush.msra.mxu0 0.0
    %705 = vmatpush.msra.mxu0 %v685
    %706 = vmatmul.f32.gmra.mxu0 %v688
    %v707 = vpop.f32.mrf.mxu0
    %v708 = vadd.f32 0.0, %v707
    %709 = vdwg.mxu0
    %v710 = vadd.f32 %v628, %v708
    %711 = vrot.lane.b32.xlu0 %v109, 80
    %v712 = vpop.permute.xlu0 %711
    %713 = vrot.lane.b32.xlu0 %v109, 72
    %v714 = vpop.permute.xlu0 %713
    %v715 = vsel %vm151, %v712, 0
    %v717 = vsel %vm151, %v714, 0
    %719 = vmatpush.xpose.msra.mxu0 0.0
    %720 = vmatpush.xpose.msra.mxu0 0.0
    %721 = vmatpush.xpose.msra.mxu0 0.0
    %722 = vmatpush.xpose.msra.mxu0 0.0
    %723 = vmatpush.xpose.msra.mxu0 0.0
    %724 = vmatpush.xpose.msra.mxu0 0.0
    %725 = vmatpush.xpose.msra.mxu0 0.0
    %726 = vmatpush.xpose.msra.mxu0 0.0
    %727 = vmatpush.xpose.msra.mxu0 0.0
    %728 = vmatpush.xpose.msra.mxu0 0.0
    %729 = vmatpush.xpose.msra.mxu0 0.0
    %730 = vmatpush.xpose.msra.mxu0 0.0
    %731 = vmatpush.xpose.msra.mxu0 0.0
    %732 = vmatpush.xpose.msra.mxu0 0.0
    %733 = vmatpush.xpose.msra.mxu0 0.0
    %734 = vmatpush.xpose.msra.mxu0 %v717
    %735 = vmatmul.f32.gmra.mxu0 %v715
    %v736 = vpop.f32.mrf.mxu0
    %v737 = vadd.f32 0.0, %v736
    %738 = vdwg.mxu0
    %v739 = vmul.f32 %v737, 0.35355338
    %v740 = vsel %vm146, -1e+30, %v739
    %v741 = vsel %vm151, %v740, -inf
    %742 = vmax.xlane.f32.xlu0 %v741
    %v743 = vpop.xlane.xlu0 %742
    %v744 = vsub.f32 %v740, %v743
    %v745 = vmul.f32 %v744, 1.442695
    %v746 = vpow.pop %v745
    %v747 = vsel %vm151, %v746, 0.0
    %748 = vadd.xlane.f32.xlu0 %v747
    %v749 = vpop.xlane.xlu0 %748
    %v750 = vrcp.pop %v749
    %v751 = vmul.f32 %v749, %v750
    %v752 = vsub.f32 1.0, %v751
    %v753 = vmul.f32 %v750, %v752
    %v754 = vadd.f32 %v750, %v753
    %vm755 = vweird.f32 %v749
    %vm756 = vweird.f32 %v750
    %vm757 = vmor %vm755, %vm756
    %v758 = vsel %vm757, %v750, %v754
    %v759 = vand.u32 2147483647, %v749
    %vm760 = vcmp.eq.f32.partialorder %v759, 8.507059e+37
    %v761 = vand.u32 %v749, 2147483648
    %v762 = vor.u32 1.1754944e-38, %v761
    %v763 = vsel %vm760, %v762, %v758
    %v764 = vmul.f32 %v746, %v763
    %765 = vrot.lane.b32.xlu0 %v140, 32
    %v766 = vpop.permute.xlu0 %765
    %v769 = vsel %vm151, %v764, 0
    %771 = vmatpush.msra.mxu0 0.0
    %772 = vmatpush.msra.mxu0 0.0
    %773 = vmatpush.msra.mxu0 0.0
    %774 = vmatpush.msra.mxu0 0.0
    %775 = vmatpush.msra.mxu0 0.0
    %776 = vmatpush.msra.mxu0 0.0
    %777 = vmatpush.msra.mxu0 0.0
    %778 = vmatpush.msra.mxu0 0.0
    %779 = vmatpush.msra.mxu0 0.0
    %780 = vmatpush.msra.mxu0 0.0
    %781 = vmatpush.msra.mxu0 0.0
    %782 = vmatpush.msra.mxu0 0.0
    %783 = vmatpush.msra.mxu0 0.0
    %784 = vmatpush.msra.mxu0 0.0
    %785 = vmatpush.msra.mxu0 0.0
    %786 = vmatpush.msra.mxu0 %v766
    %787 = vmatmul.f32.gmra.mxu0 %v769
    %v788 = vpop.f32.mrf.mxu0
    %v789 = vadd.f32 0.0, %v788
    %790 = vdwg.mxu0
    %v791 = vadd.f32 %v710, %v789
    %v792 = vadd.f32 %v791, %v469
    %793 = vst.msk [vmem:[#allocation8 + $0x8] sm:$0xff] %vm81, %v792
    // Predicated region
    $region38: #{tpu_custom_call.1} parent=1 // pred_check
      _
    $region39: #{tpu_custom_call.1} parent=1 // pred_check_branch
      %795 = sbr.rel (0) target = $region41
    $region40: #{tpu_custom_call.1} parent=1 // pred_region
      %797 = vsyncadd [#allocation4], 0
      %s798 = sshll.u32 [#allocation8], 4
      %s799 = int_to_ptr.vmem [resolvable:$true] %s798
      %s800 = sshll.u32 %s6, 4
      %s801 = int_to_ptr.hbm [resolvable:$true] %s800
      %806 = dma.vmem_to_hbm [thread:$0]  %s799, 256, %s801, [#allocation4], 128, 128, 8
    $region41: #{tpu_custom_call.1} parent=1 // pred_fallthru
      _
    // Predicated region
    $region42: #{tpu_custom_call.1} parent=1 // pred_check
      _
    $region43: #{tpu_custom_call.1} parent=1 // pred_check_branch
      %808 = sbr.rel (0) target = $region45
    $region44: #{tpu_custom_call.1} parent=1 // pred_region
      %810 = dma.done [#allocation4], 256
    $region45: #{tpu_custom_call.1} parent=1 // pred_fallthru
      _
    %811 = vsyncpa [#allocation3], 1
    %812 = vsyncpa [#allocation6], 1
    %813 = vsyncpa [#allocation4], 1

</llo_original>
